<compile_context>
chip_gen: v7x
topology: tpu7x:2x2x1
jax: 0.10.0
libtpu: 0.0.40
codegen_flags: <defaults>
</compile_context>

<pallas_src>
import functools

import jax
import jax.numpy as jnp
import numpy as np
from jax.experimental import pallas as pl
from jax.experimental.pallas import tpu as pltpu


def _round_up(x: int, m: int) -> int:
    return ((x + m - 1) // m) * m


def _lane_argmax(vals_f32, num_label: int):
    """First-occurrence argmax over the last (lane) axis.

    vals_f32: (R, L) float32.  Returns (R, 1) int32 clamped to [0, L-1].
    """
    R, L = vals_f32.shape
    lbl = jax.lax.broadcasted_iota(jnp.int32, (R, L), 1)
    maxv = jnp.max(vals_f32, axis=1, keepdims=True)                  # XLU lane reduce
    idx = jnp.min(jnp.where(vals_f32 == maxv, lbl, L), axis=1, keepdims=True)
    # NaN / stale-tail guard: never emit an out-of-range label index.
    return jnp.minimum(idx, num_label - 1)


def _greedy_ctc_kernel(em_ref, ov_ref, out_ref, *, blank: int):
    """em_ref:  (tile_t, L) logits block (time on sublanes, labels on lanes).
    ov_ref:  (8, L) overlap block ending at this tile's first timestep (its
             last row is timestep tile_start - 1; ignored for tile 0).
    out_ref: (tile_t, 1) int32 fused output: label index, or -1 if the
             timestep is removed by unique_consecutive / blank filtering."""
    t_tile = pl.program_id(0)
    Tt, L = em_ref.shape

    vals = em_ref[...].astype(jnp.float32)                           # (Tt, L)
    idx = _lane_argmax(vals, L)                                      # (Tt, 1)

    # argmax of the last timestep of the previous tile (from the overlap block).
    ov_idx = _lane_argmax(ov_ref[...].astype(jnp.float32), L)        # (8, 1)
    rows8 = jax.lax.broadcasted_iota(jnp.int32, (8, 1), 0)
    ov_last = jnp.max(jnp.where(rows8 == 7, ov_idx, -1),
                      axis=0, keepdims=True)                         # (1, 1)
    # boundary = ov_last for tiles > 0, else the -1 sentinel (branch-free,
    # avoids a scalar-predicated select).
    not_first = (t_tile > 0).astype(jnp.int32)
    boundary = ov_last * not_first + (not_first - 1)                 # (1, 1)

    # prev[i] = idx[i-1]; row 0 takes the cross-tile boundary value.
    prev = pltpu.roll(idx, shift=1, axis=0)                          # (Tt, 1)
    rows = jax.lax.broadcasted_iota(jnp.int32, (Tt, 1), 0)
    prev = jnp.where(rows == 0, boundary, prev)

    keep = (idx != blank) & (idx != prev)
    out_ref[...] = jnp.where(keep, idx, -1)


def greedy_ctc_pallas(emission: jnp.ndarray, blank: int = 0, tile_t=None):
    """emission: [T, L] logits (float32 or bfloat16), consumed as-is (no
    transpose / pad / extra HBM pass in the wrapper).

    Returns a (T,) int32 array: argmax label per timestep, or -1 for timesteps
    removed by unique_consecutive / blank filtering."""
    T, L = emission.shape
    itemsize = jnp.dtype(emission.dtype).itemsize

    if tile_t is None:
        # Double-buffered working set (input block + lane-padded int32 output
        # block) kept ~16 MiB: safe under a 32 MiB scoped limit on every
        # generation, including v7x (64 MiB physical VMEM).  bf16 inputs get a
        # proportionally larger tile for free.
        in_row = _round_up(L, 128) * itemsize        # minor dim pads to 128 lanes
        out_row = 128 * 4                            # (tile_t, 1) int32, lane-padded
        tile_t = (16 * 1024 * 1024) // (2 * (in_row + out_row))
    tile_t = max(8, (int(tile_t) // 8) * 8)          # sublane-aligned
    tile_t = min(tile_t, _round_up(T, 8))            # single tile for short inputs
    blk8 = tile_t // 8
    n_t = pl.cdiv(T, tile_t)

    fused = pl.pallas_call(
        functools.partial(_greedy_ctc_kernel, blank=int(blank)),
        out_shape=jax.ShapeDtypeStruct((T, 1), jnp.int32),
        grid_spec=pltpu.PrefetchScalarGridSpec(
            num_scalar_prefetch=0,
            grid=(n_t,),
            in_specs=[
                # Main tile: rows [t*tile_t, (t+1)*tile_t) of the emission.
                pl.BlockSpec((tile_t, L), lambda t: (t, 0)),
                # 8-row overlap ending at this tile's first row (clamped to
                # block 0 for t == 0, where its value is ignored).
                pl.BlockSpec((8, L), lambda t: (jnp.maximum(t * blk8 - 1, 0), 0)),
            ],
            out_specs=pl.BlockSpec((tile_t, 1), lambda t: (t, 0)),
        ),
        compiler_params=pltpu.CompilerParams(
            # No cross-iteration state -> time tiles shard across both
            # TensorCores on v7x (neutral on single-TC v5e/v6e).
            dimension_semantics=("parallel",),
            vmem_limit_bytes=32 * 1024 * 1024,
        ),
    )(emission, emission)
    return fused[:, 0]


def greedy_ctc_decode(emission, labels, blank: int = 0, tile_t=None) -> str:
    """Full GreedyCTCDecoder.forward equivalent (returns a Python str)."""
    fused = greedy_ctc_pallas(emission, blank=blank, tile_t=tile_t)
    fused_host = jax.device_get(jax.block_until_ready(fused))
    # TODO(synk): the final transcript string join is host-side Python; there is
    # no Pallas equivalent for string construction.
    return ''.join(labels[int(i)] for i in fused_host if i >= 0)


def _reference_decode(emission_np, labels, blank: int = 0) -> str:
    """Pure NumPy/Python reference of the PyTorch semantics."""
    idx = np.argmax(emission_np, axis=-1)
    out, prev = [], None
    for i in idx:
        i = int(i)
        if i != prev and i != blank:
            out.append(labels[i])
        prev = i
    return ''.join(out)


if __name__ == "__main__":
    num_seq, num_label = 8, 32
    labels = "-" + "abcdefghijklmnopqrstuvwxyz'. |?"   # 32 labels, index 0 = blank
    assert len(labels) == num_label

    key = jax.random.PRNGKey(0)
    k1, k2, k3 = jax.random.split(key, 3)

    # Case 1: tiny emission (matches the module's demo shape), single tile.
    emission = jax.random.normal(k1, (num_seq, num_label), dtype=jnp.float32)
    fused = greedy_ctc_pallas(emission, blank=0)
    jax.block_until_ready(fused)

    transcript = greedy_ctc_decode(emission, labels, blank=0)
    ref_transcript = _reference_decode(np.asarray(emission), labels, blank=0)
    assert transcript == ref_transcript, (transcript, ref_transcript)

    # Case 1b: non-default blank index.
    transcript_b = greedy_ctc_decode(emission, labels, blank=4)
    ref_transcript_b = _reference_decode(np.asarray(emission), labels, blank=4)
    assert transcript_b == ref_transcript_b, (transcript_b, ref_transcript_b)

    # Case 2: longer ragged sequence with deliberate consecutive repeats and
    # blanks; tile_t=64 -> 4 time tiles with a partial tail (exercises the
    # overlap-block dedup and partial-block clipping, no pad).
    T2 = 250
    tgt = jax.random.randint(k2, (T2,), 0, num_label)
    emission2 = (5.0 * jax.nn.one_hot(tgt, num_label, dtype=jnp.float32)
                 + 0.1 * jax.random.normal(k3, (T2, num_label), dtype=jnp.float32))
    transcript2 = greedy_ctc_decode(emission2, labels, blank=0, tile_t=64)
    ref_transcript2 = _reference_decode(np.asarray(emission2), labels, blank=0)
    assert transcript2 == ref_transcript2, (transcript2, ref_transcript2)

    # Case 3: bfloat16 emission (halves the dominant HBM read).
    emission3 = emission2.astype(jnp.bfloat16)
    transcript3 = greedy_ctc_decode(emission3, labels, blank=0, tile_t=64)
    ref_transcript3 = _reference_decode(
        np.asarray(emission3).astype(np.float32), labels, blank=0)
    assert transcript3 == ref_transcript3, (transcript3, ref_transcript3)

    print("KERNEL_OK")
</pallas_src>

<mosaic_0001>
module attributes {stable_mosaic.version = 11 : i64} {
  func.func @_greedy_ctc_kernel(%arg0: i32, %arg1: memref<8x32xf32, #tpu.memory_space<vmem>>, %arg2: memref<8x32xf32, #tpu.memory_space<vmem>>, %arg3: memref<8x1xi32, #tpu.memory_space<vmem>>) attributes {dimension_semantics = [#tpu.dimension_semantics<parallel>], iteration_bounds = array<i64: 1>, scalar_prefetch = 0 : i64, scratch_operands = 0 : i64, tpu.core_type = #tpu.core_type<tc>, window_params = [{transform_indices = @transform_0, window_bounds = array<i64: 8, 32>}, {transform_indices = @transform_1, window_bounds = array<i64: 8, 32>}, {transform_indices = @transform_2, window_bounds = array<i64: 8, 1>}]} {
    %c0 = arith.constant 0 : index
    %c0_0 = arith.constant 0 : index
    %0 = vector.load %arg1[%c0, %c0_0] : memref<8x32xf32, #tpu.memory_space<vmem>>, vector<8x32xf32>
    %1 = tpu.iota {dimensions = array<i32: 1>} : vector<8x32xi32>
    %cst = arith.constant dense<0xFF800000> : vector<8xf32>
    %2 = vector.multi_reduction <maximumf>, %0, %cst [1] : vector<8x32xf32> to vector<8xf32>
    %3 = vector.shape_cast %2 : vector<8xf32> to vector<8x1xf32>
    %4 = vector.broadcast %3 : vector<8x1xf32> to vector<8x32xf32>
    %5 = arith.cmpf oeq, %0, %4 : vector<8x32xf32>
    %c32_i32 = arith.constant 32 : i32
    %6 = vector.broadcast %c32_i32 : i32 to vector<8x32xi32>
    %7 = arith.select %5, %1, %6 : vector<8x32xi1>, vector<8x32xi32>
    %cst_1 = arith.constant dense<2147483647> : vector<8xi32>
    %8 = vector.multi_reduction <minsi>, %7, %cst_1 [1] : vector<8x32xi32> to vector<8xi32>
    %9 = vector.shape_cast %8 : vector<8xi32> to vector<8x1xi32>
    %c31_i32 = arith.constant 31 : i32
    %10 = vector.broadcast %c31_i32 : i32 to vector<8x1xi32>
    %11 = arith.minsi %9, %10 : vector<8x1xi32>
    %c0_2 = arith.constant 0 : index
    %c0_3 = arith.constant 0 : index
    %12 = vector.load %arg2[%c0_2, %c0_3] : memref<8x32xf32, #tpu.memory_space<vmem>>, vector<8x32xf32>
    %13 = tpu.iota {dimensions = array<i32: 1>} : vector<8x32xi32>
    %cst_4 = arith.constant dense<0xFF800000> : vector<8xf32>
    %14 = vector.multi_reduction <maximumf>, %12, %cst_4 [1] : vector<8x32xf32> to vector<8xf32>
    %15 = vector.shape_cast %14 : vector<8xf32> to vector<8x1xf32>
    %16 = vector.broadcast %15 : vector<8x1xf32> to vector<8x32xf32>
    %17 = arith.cmpf oeq, %12, %16 : vector<8x32xf32>
    %c32_i32_5 = arith.constant 32 : i32
    %18 = vector.broadcast %c32_i32_5 : i32 to vector<8x32xi32>
    %19 = arith.select %17, %13, %18 : vector<8x32xi1>, vector<8x32xi32>
    %cst_6 = arith.constant dense<2147483647> : vector<8xi32>
    %20 = vector.multi_reduction <minsi>, %19, %cst_6 [1] : vector<8x32xi32> to vector<8xi32>
    %21 = vector.shape_cast %20 : vector<8xi32> to vector<8x1xi32>
    %c31_i32_7 = arith.constant 31 : i32
    %22 = vector.broadcast %c31_i32_7 : i32 to vector<8x1xi32>
    %23 = arith.minsi %21, %22 : vector<8x1xi32>
    %24 = tpu.iota {dimensions = array<i32: 0>} : vector<8x1xi32>
    %c7_i32 = arith.constant 7 : i32
    %25 = vector.broadcast %c7_i32 : i32 to vector<8x1xi32>
    %26 = arith.cmpi eq, %24, %25 : vector<8x1xi32>
    %c-1_i32 = arith.constant -1 : i32
    %27 = vector.broadcast %c-1_i32 : i32 to vector<8x1xi32>
    %28 = arith.select %26, %23, %27 : vector<8x1xi1>, vector<8x1xi32>
    %cst_8 = arith.constant dense<-2147483648> : vector<1xi32>
    %29 = vector.multi_reduction <maxsi>, %28, %cst_8 [0] : vector<8x1xi32> to vector<1xi32>
    %30 = vector.shape_cast %29 : vector<1xi32> to vector<1x1xi32>
    %c0_i32 = arith.constant 0 : i32
    %31 = arith.cmpi sgt, %arg0, %c0_i32 : i32
    %32 = arith.extui %31 : i1 to i32
    %33 = vector.broadcast %32 : i32 to vector<1x1xi32>
    %34 = arith.muli %30, %33 : vector<1x1xi32>
    %c1_i32 = arith.constant 1 : i32
    %35 = arith.subi %32, %c1_i32 : i32
    %36 = vector.broadcast %35 : i32 to vector<1x1xi32>
    %37 = arith.addi %34, %36 : vector<1x1xi32>
    %c1_i32_9 = arith.constant 1 : i32
    %38 = tpu.dynamic_rotate %11 by %c1_i32_9 dim 0 : vector<8x1xi32>, i32 -> vector<8x1xi32>
    %39 = tpu.iota {dimensions = array<i32: 0>} : vector<8x1xi32>
    %c0_i32_10 = arith.constant 0 : i32
    %40 = vector.broadcast %c0_i32_10 : i32 to vector<8x1xi32>
    %41 = arith.cmpi eq, %39, %40 : vector<8x1xi32>
    %42 = vector.shape_cast %37 : vector<1x1xi32> to vector<1x1xi32>
    %43 = vector.broadcast %42 : vector<1x1xi32> to vector<8x1xi32>
    %44 = arith.select %41, %43, %38 : vector<8x1xi1>, vector<8x1xi32>
    %c0_i32_11 = arith.constant 0 : i32
    %45 = vector.broadcast %c0_i32_11 : i32 to vector<8x1xi32>
    %46 = arith.cmpi ne, %11, %45 : vector<8x1xi32>
    %47 = arith.cmpi ne, %11, %44 : vector<8x1xi32>
    %48 = arith.andi %46, %47 : vector<8x1xi1>
    %c-1_i32_12 = arith.constant -1 : i32
    %49 = vector.broadcast %c-1_i32_12 : i32 to vector<8x1xi32>
    %50 = arith.select %48, %11, %49 : vector<8x1xi1>, vector<8x1xi32>
    %c0_13 = arith.constant 0 : index
    %c0_14 = arith.constant 0 : index
    %51 = vector.load %arg3[%c0_13, %c0_14] : memref<8x1xi32, #tpu.memory_space<vmem>>, vector<8x1xi32>
    tpu.vector_store %arg3[%c0_13, %c0_14], %50 {strides = array<i32>} : memref<8x1xi32, #tpu.memory_space<vmem>>, vector<8x1xi32>,
    return
  }
  func.func @transform_0(%arg0: i32) -> (i32, i32) {
    %c0_i32 = arith.constant 0 : i32
    %c0_i32_0 = arith.constant 0 : i32
    return %arg0, %c0_i32 : i32, i32
  }
  func.func @transform_1(%arg0: i32) -> (i32, i32) {
    %c1_i32 = arith.constant 1 : i32
    %0 = arith.muli %arg0, %c1_i32 : i32
    %c1_i32_0 = arith.constant 1 : i32
    %1 = arith.subi %0, %c1_i32_0 : i32
    %c0_i32 = arith.constant 0 : i32
    %2 = arith.maxsi %1, %c0_i32 : i32
    %c0_i32_1 = arith.constant 0 : i32
    %c0_i32_2 = arith.constant 0 : i32
    return %2, %c0_i32_1 : i32, i32
  }
  func.func @transform_2(%arg0: i32) -> (i32, i32) {
    %c0_i32 = arith.constant 0 : i32
    %c0_i32_0 = arith.constant 0 : i32
    return %arg0, %c0_i32 : i32, i32
  }
}

</mosaic_0001>

<llo_original>
// kernel: tpu_custom_call.1
$region0: #{tpu_custom_call.1}
  #allocation0 [shape = 'u32[]', space=smem, size = 0x4, offset = 0x4, fixed_abs, tag = 'smem constant byte address 0x4 - core index']
  #allocation1 [shape = 'u32[144,128]{1,0:T(1,128)}', space=vmem, size = 0x12000, scoped, tag = 'internal scratch']
  %s0 = inlined_call_operand.hbm [shape: f32[8,32], index: 0, kind: input, shape index: {}]
  %s1 = inlined_call_operand.hbm [shape: f32[8,32], index: 1, kind: input, shape index: {}]
  %s2 = inlined_call_operand.vmem [shape: s32[8,1], index: 2, kind: output, shape index: {}]
  %s3 = sld [smem:[#allocation0]]
  $region26: #{tpu_custom_call.1} parent=0
    _
  %s5 = ssub.s32 1, %s3
  %s6 = scalar_select 0, %s5, %s3
  $region1: #{tpu_custom_call.1} parent=0
    #allocation2 [shape = 'u8[4096]{0}', space=vmem, size = 0x1000, scoped, tag = 'input window, operand 0, single buffered']
    #allocation3 [shape = 's32[1]{0}', space=sflag, size = 0x4, scoped, tag = 'scoped memory for tpu_custom_call.1']
    #allocation4 [shape = 'u8[4096]{0}', space=vmem, size = 0x1000, scoped, tag = 'input window, operand 1, single buffered']
    #allocation5 [shape = 's32[1]{0}', space=sflag, size = 0x4, scoped, tag = 'scoped memory for tpu_custom_call.1']
    %7 = vsyncpa [#allocation3], 0
    %8 = vsyncpa [#allocation5], 0
    // Predicated region
    $region2: #{tpu_custom_call.1} parent=1 // pred_check
      _
    $region3: #{tpu_custom_call.1} parent=1 // pred_check_branch
      %10 = sbr.rel (0) target = $region5
    $region4: #{tpu_custom_call.1} parent=1 // pred_region
      %s12 = ssub.s32 128, 128
      %13 = vsyncadd [#allocation3], %s12
      %s15 = sshll.u32 [#allocation2], 4
      %s16 = int_to_ptr.vmem [resolvable:$true] %s15
      %18 = dma.hbm_to_vmem [thread:$0]  %s0, 128, %s16, [#allocation3]
    $region5: #{tpu_custom_call.1} parent=1 // pred_fallthru
      _
    // Predicated region
    $region6: #{tpu_custom_call.1} parent=1 // pred_check
      _
    $region7: #{tpu_custom_call.1} parent=1 // pred_check_branch
      %20 = sbr.rel (0) target = $region9
    $region8: #{tpu_custom_call.1} parent=1 // pred_region
      %s21 = ssub.s32 0, 1
      %p22 = scmp.gt.s32.totalorder %s21, 0
      %s23 = scalar_select %p22, %s21, 0
      %s25 = ssub.s32 128, 128
      %26 = vsyncadd [#allocation5], %s25
      %s27 = smul.addr %s23, 128
      %s28 = scalar_lea.hbm %s1, %s27
      %s30 = sshll.u32 [#allocation4], 4
      %s31 = int_to_ptr.vmem [resolvable:$true] %s30
      %33 = dma.hbm_to_vmem [thread:$0]  %s28, 128, %s31, [#allocation5]
    $region9: #{tpu_custom_call.1} parent=1 // pred_fallthru
      _
    // Predicated region
    $region10: #{tpu_custom_call.1} parent=1 // pred_check
      _
    $region11: #{tpu_custom_call.1} parent=1 // pred_check_branch
      %35 = sbr.rel (0) target = $region13
    $region12: #{tpu_custom_call.1} parent=1 // pred_region
      %36 = dma.done [#allocation3], 128
    $region13: #{tpu_custom_call.1} parent=1 // pred_fallthru
      _
    // Predicated region
    $region14: #{tpu_custom_call.1} parent=1 // pred_check
      _
    $region15: #{tpu_custom_call.1} parent=1 // pred_check_branch
      %38 = sbr.rel (0) target = $region17
    $region16: #{tpu_custom_call.1} parent=1 // pred_region
      %39 = dma.done [#allocation5], 128
    $region17: #{tpu_custom_call.1} parent=1 // pred_fallthru
      _
    %s40 = ssub.s32 0, 1
    %p41 = scmp.gt.s32.totalorder %s40, 0
    %s42 = scalar_select %p41, %s40, 0
    %v43 = vld [vmem:[#allocation2] sm:$0xff]
    %v44 = vlaneseq
    %v45 = vand.u32 %v44, 127
    %vm46 = vcmask 261120
    %v47 = vsel %vm46, %v43, -inf
    %48 = vmax.xlane.f32.xlu0 %v47
    %v49 = vpop.xlane.xlu0 %48
    %vm50 = vcmp.eq.f32.partialorder %v43, %v49
    %v51 = vsel %vm50, %v45, 32
    %v52 = vsel %vm46, %v51, 2147483647
    %v53 = vand.u32 %v52, 65535
    %v54 = vshra.s32 %v52, 16
    %v55 = vcvt.s32.f32 %v53
    %v56 = vcvt.s32.f32 %v54
    %57 = vmin.xlane.f32.xlu0 %v56
    %v58 = vpop.xlane.xlu0 %57
    %vm59 = vcmp.eq.f32.partialorder %v56, %v58
    %v60 = vsel %vm59, %v55, inf
    %61 = vmin.xlane.f32.xlu0 %v60
    %v62 = vpop.xlane.xlu0 %61
    %v63 = vcvt.f32.s32 %v62
    %v64 = vcvt.f32.s32 %v58
    %v65 = vshll.u32 %v64, 16
    %v66 = vadd.s32 %v65, %v63
    %vm67 = vcmp.lt.s32.totalorder %v66, 31
    %v68 = vsel %vm67, %v66, 31
    %v69 = vld [vmem:[#allocation4] sm:$0xff]
    %v70 = vsel %vm46, %v69, -inf
    %71 = vmax.xlane.f32.xlu0 %v70
    %v72 = vpop.xlane.xlu0 %71
    %vm73 = vcmp.eq.f32.partialorder %v69, %v72
    %v74 = vsel %vm73, %v45, 32
    %v75 = vsel %vm46, %v74, 2147483647
    %v76 = vand.u32 %v75, 65535
    %v77 = vshra.s32 %v75, 16
    %v78 = vcvt.s32.f32 %v76
    %v79 = vcvt.s32.f32 %v77
    %80 = vmin.xlane.f32.xlu0 %v79
    %v81 = vpop.xlane.xlu0 %80
    %vm82 = vcmp.eq.f32.partialorder %v79, %v81
    %v83 = vsel %vm82, %v78, inf
    %84 = vmin.xlane.f32.xlu0 %v83
    %v85 = vpop.xlane.xlu0 %84
    %v86 = vcvt.f32.s32 %v85
    %v87 = vcvt.f32.s32 %v81
    %v88 = vshll.u32 %v87, 16
    %v89 = vadd.s32 %v88, %v86
    %vm90 = vcmp.lt.s32.totalorder %v89, 31
    %v91 = vsel %vm90, %v89, 31
    %v92 = vlaneseq
    %v93 = vshrl.u32 %v92, 7
    %vm94 = vcmp.eq.s32.totalorder %v93, 7
    %v95 = vsel %vm94, %v91, 4294967295
    %v96 = vrot.slane %v95, 4
    %vm97 = vcmp.gt.s32.totalorder %v95, %v96
    %v98 = vsel %vm97, %v95, %v96
    %v99 = vrot.slane %v98, 2
    %vm100 = vcmp.gt.s32.totalorder %v98, %v99
    %v101 = vsel %vm100, %v98, %v99
    %v102 = vrot.slane %v101, 1
    %vm103 = vcmp.gt.s32.totalorder %v101, %v102
    %v104 = vsel %vm103, %v101, %v102
    %p105 = scmp.gt.s32.totalorder 0, 0
    %s106 = scalar_select %p105, 1, 0
    %v107 = vstv %s106
    %v108 = vmul.u32 %v104, %v107
    %s109 = ssub.s32 %s106, 1
    %v110 = vstv %s109
    %v111 = vadd.s32 %v108, %v110
    %v112 = vrot.slane %v68, 7
    %vm113 = vcmp.eq.s32.totalorder %v93, 0
    %v114 = vsel %vm113, %v111, %v112
    %vm115 = vcmp.ne.s32.totalorder %v68, 0
    %vm116 = vcmp.ne.s32.totalorder %v68, %v114
    %vm117 = vmand %vm115, %vm116
    %v118 = vsel %vm117, %v68, 4294967295
    %vm119 = vcmask 7168
    %120 = vst.msk [vmem:[%s2] sm:$0xff] %vm119, %v118
    // Predicated region
    $region18: #{tpu_custom_call.1} parent=1 // pred_check
      _
    $region19: #{tpu_custom_call.1} parent=1 // pred_check_branch
      %122 = sbr.rel (0) target = $region21
    $region20: #{tpu_custom_call.1} parent=1 // pred_region
      _
    $region21: #{tpu_custom_call.1} parent=1 // pred_fallthru
      _
    // Predicated region
    $region22: #{tpu_custom_call.1} parent=1 // pred_check
      _
    $region23: #{tpu_custom_call.1} parent=1 // pred_check_branch
      %124 = sbr.rel (0) target = $region25
    $region24: #{tpu_custom_call.1} parent=1 // pred_region
      _
    $region25: #{tpu_custom_call.1} parent=1 // pred_fallthru
      _
    %125 = vsyncpa [#allocation3], 1
    %126 = vsyncpa [#allocation5], 1

</llo_original>
